<compile_context>
chip_gen: v7x
topology: tpu7x:2x2x1
jax: 0.10.0
libtpu: 0.0.40
codegen_flags: <defaults>
</compile_context>

<pallas_src>
import jax
import jax.numpy as jnp
from jax.experimental import pallas as pl
from jax.experimental.pallas import tpu as pltpu

HIDDEN_DIM = 128      # module's hidden_dim
NUM_HIDDEN = 3        # module's num_layers - 1 residual hidden layers
LANE = 128
SUBLANE_BF16 = 16     # bf16 sublane packing -> batch tile multiple of 16


def _round_up(x, m):
    return (x + m - 1) // m * m


def _cdiv(a, b):
    return (a + b - 1) // b


def mlp_deep_residual_kernel(x_ref, w0_ref, wh_ref, wf_ref, bh_ref, bf_ref, o_ref):
    """One batch tile of the whole MLP; all weights resident in VMEM.

    x_ref : (TM, D_in)            bf16  batch tile of the flattened image
    w0_ref: (D_in, H)             bf16  fc_initial weight
    wh_ref: (NUM_HIDDEN, H, H)    bf16  stacked hidden-layer weights
    wf_ref: (H, C_pad)            bf16  fc_final weight, class dim padded to 128
    bh_ref: (NUM_HIDDEN + 1, H)   f32   stacked hidden biases [b0 .. b3]
    bf_ref: (1, C_pad)            f32   final bias (padded)
    o_ref : (TM, C_pad)           f32   logits tile (padded class dim)
    """
    compute_dtype = w0_ref.dtype

    # out = relu(fc_initial(x))   (bf16 MXU inputs, f32 accumulation)
    out = jnp.maximum(
        jnp.dot(x_ref[...], w0_ref[...], preferred_element_type=jnp.float32)
        + bh_ref[0:1, :],
        0.0,
    )

    # for layer in hidden_layers: out = relu(layer(out)) + out
    for i in range(NUM_HIDDEN):
        residual = out
        out = jnp.maximum(
            jnp.dot(out.astype(compute_dtype), wh_ref[i],
                    preferred_element_type=jnp.float32)
            + bh_ref[i + 1:i + 2, :],
            0.0,
        ) + residual

    # logits = fc_final(out)    (class dim is lane-dense: padded to 128)
    o_ref[...] = (
        jnp.dot(out.astype(compute_dtype), wf_ref[...],
                preferred_element_type=jnp.float32)
        + bf_ref[...]
    ).astype(o_ref.dtype)


def mlp_classifier_deep_residual(x_nchw, params, *, matmul_dtype=jnp.bfloat16):
    """x_nchw: (b, 3, H, W) float32. params: dict of f32 weights/biases."""
    b = x_nchw.shape[0]
    # torch: x.view(b, -1); cast once here so only bf16 is streamed per grid step.
    x_flat = x_nchw.reshape(b, -1).astype(matmul_dtype)
    d_in = x_flat.shape[1]
    h = HIDDEN_DIM
    num_classes = params["wf"].shape[1]
    c_pad = _round_up(max(num_classes, LANE), LANE)       # lane-dense output

    # Batch tile: multiple of 16 (bf16 packing), capped at 128 (MXU tile).
    # For b > 16, target >= 2 tiles so v7x's two TensorCores both get work.
    if b > SUBLANE_BF16:
        tm = min(128, max(SUBLANE_BF16, _round_up(_cdiv(b, 2), SUBLANE_BF16)))
    else:
        tm = SUBLANE_BF16

    # Conservative VMEM footprint (double-buffered x/out tiles + resident
    # weights; Pallas double-buffers the constant-index_map operands too).
    def footprint(tm_):
        bf16, f32 = 2, 4
        return (2 * tm_ * d_in * bf16                 # x tile
                + 2 * d_in * h * bf16                 # w0
                + 2 * NUM_HIDDEN * h * h * bf16       # hidden weights
                + 2 * h * c_pad * bf16                # wf
                + 2 * (NUM_HIDDEN + 1) * h * f32      # hidden biases
                + 2 * c_pad * f32                     # final bias
                + 2 * tm_ * c_pad * f32)              # out tile

    vmem_budget = 12 * 1024 * 1024   # headroom under v5e's 16 MiB scoped default
    while tm > SUBLANE_BF16 and footprint(tm) > vmem_budget:
        tm -= SUBLANE_BF16

    compiler_kwargs = dict(dimension_semantics=("parallel",))
    fp = footprint(tm)
    if fp > vmem_budget:
        # Very large d_in even at tm=16: raise the scoped VMEM limit with
        # headroom, capped well under v7x's 64 MiB physical VMEM.
        compiler_kwargs["vmem_limit_bytes"] = min(int(fp * 1.25) + (2 << 20), 56 << 20)

    # Pack operands: 6 inputs instead of 11 tiny ones.
    w0 = params["w0"].astype(matmul_dtype)                                 # (D_in, H)
    wh = jnp.stack(
        [params[f"w{i}"] for i in range(1, NUM_HIDDEN + 1)]
    ).astype(matmul_dtype)                                                 # (3, H, H)
    wf = (
        jnp.zeros((h, c_pad), jnp.float32)
        .at[:, :num_classes].set(params["wf"])
        .astype(matmul_dtype)
    )                                                                      # (H, C_pad)
    bh = jnp.stack(
        [params["b0"].reshape(-1)]
        + [params[f"b{i}"].reshape(-1) for i in range(1, NUM_HIDDEN + 1)]
    ).astype(jnp.float32)                                                  # (4, H)
    bf = (
        jnp.zeros((1, c_pad), jnp.float32)
        .at[0, :num_classes].set(params["bf"].reshape(-1))
    )                                                                      # (1, C_pad)

    # No batch pad: Pallas masks the partial last tile; rows are independent
    # and out-of-bounds rows are never written back.
    grid = (_cdiv(b, tm),)
    out_padded = pl.pallas_call(
        mlp_deep_residual_kernel,
        out_shape=jax.ShapeDtypeStruct((b, c_pad), jnp.float32),
        grid=grid,
        in_specs=[
            pl.BlockSpec((tm, d_in), lambda i: (i, 0)),                 # streamed x (bf16)
            pl.BlockSpec((d_in, h), lambda i: (0, 0)),                  # resident
            pl.BlockSpec((NUM_HIDDEN, h, h), lambda i: (0, 0, 0)),      # resident
            pl.BlockSpec((h, c_pad), lambda i: (0, 0)),                 # resident
            pl.BlockSpec((NUM_HIDDEN + 1, h), lambda i: (0, 0)),        # resident
            pl.BlockSpec((1, c_pad), lambda i: (0, 0)),                 # resident
        ],
        out_specs=pl.BlockSpec((tm, c_pad), lambda i: (i, 0)),
        compiler_params=pltpu.CompilerParams(**compiler_kwargs),
    )(x_flat, w0, wh, wf, bh, bf)

    # Strip the class-dim padding back to the module's (b, num_classes).
    return out_padded[:, :num_classes]


def init_params(key, h, w, hidden_dim=HIDDEN_DIM, num_classes=6,
                num_layers=NUM_HIDDEN + 1):
    """Deterministic synthetic init. Weights stored as (in, out) so the kernel
    computes x @ W + b (equivalent to torch's x @ W.T + b with W=(out,in))."""
    d_in = h * w * 3
    keys = jax.random.split(key, 2 * (num_layers + 1))
    params = {}
    params["w0"] = 0.02 * jax.random.normal(keys[0], (d_in, hidden_dim), jnp.float32)
    params["b0"] = 0.01 * jax.random.normal(keys[1], (1, hidden_dim), jnp.float32)
    for i in range(1, num_layers):
        params[f"w{i}"] = 0.05 * jax.random.normal(
            keys[2 * i], (hidden_dim, hidden_dim), jnp.float32)
        params[f"b{i}"] = 0.01 * jax.random.normal(
            keys[2 * i + 1], (1, hidden_dim), jnp.float32)
    params["wf"] = 0.05 * jax.random.normal(
        keys[2 * num_layers], (hidden_dim, num_classes), jnp.float32)
    params["bf"] = 0.01 * jax.random.normal(
        keys[2 * num_layers + 1], (1, num_classes), jnp.float32)
    return params


def reference_forward(x_nchw, params, *, matmul_dtype=jnp.bfloat16):
    """Pure-JAX reference mirroring the PyTorch module (same mixed precision
    as the kernel: bf16 dot inputs, f32 accumulation, f32 elementwise)."""
    b = x_nchw.shape[0]
    x = x_nchw.reshape(b, -1).astype(jnp.float32)

    def mm(a, w):
        return jnp.dot(a.astype(matmul_dtype), w.astype(matmul_dtype),
                       preferred_element_type=jnp.float32)

    out = jnp.maximum(mm(x, params["w0"]) + params["b0"], 0.0)
    for i in range(1, NUM_HIDDEN + 1):
        residual = out
        out = jnp.maximum(mm(out, params[f"w{i}"]) + params[f"b{i}"], 0.0) + residual
    return mm(out, params["wf"]) + params["bf"]


if __name__ == "__main__":
    # Small shapes consistent with the module's forward: (b, 3, H, W)
    B, C, H, W = 2, 3, 16, 16
    NUM_CLASSES = 6

    key = jax.random.PRNGKey(0)
    k_x, k_p = jax.random.split(key)
    x = jax.random.normal(k_x, (B, C, H, W), jnp.float32)
    params = init_params(k_p, H, W, hidden_dim=HIDDEN_DIM, num_classes=NUM_CLASSES)

    logits = mlp_classifier_deep_residual(x, params)
    logits = jax.block_until_ready(logits)

    ref = reference_forward(x, params)
    assert logits.shape == (B, NUM_CLASSES), logits.shape
    assert jnp.allclose(logits, ref, atol=1e-3, rtol=1e-3), (
        f"max abs err {jnp.max(jnp.abs(logits - ref))}")

    print("KERNEL_OK")
</pallas_src>

<mosaic_0001>
module attributes {stable_mosaic.version = 11 : i64} {
  func.func @mlp_deep_residual_kernel(%arg0: i32, %arg1: memref<16x768xbf16, #tpu.memory_space<vmem>>, %arg2: memref<768x128xbf16, #tpu.memory_space<vmem>>, %arg3: memref<3x128x128xbf16, #tpu.memory_space<vmem>>, %arg4: memref<128x128xbf16, #tpu.memory_space<vmem>>, %arg5: memref<4x128xf32, #tpu.memory_space<vmem>>, %arg6: memref<1x128xf32, #tpu.memory_space<vmem>>, %arg7: memref<16x128xf32, #tpu.memory_space<vmem>>) attributes {dimension_semantics = [#tpu.dimension_semantics<parallel>], iteration_bounds = array<i64: 1>, scalar_prefetch = 0 : i64, scratch_operands = 0 : i64, tpu.core_type = #tpu.core_type<tc>, window_params = [{transform_indices = @transform_0, window_bounds = array<i64: 16, 768>}, {pipeline_mode = #tpu.pipeline_mode<synchronous>, transform_indices = @transform_1, window_bounds = array<i64: 768, 128>}, {pipeline_mode = #tpu.pipeline_mode<synchronous>, transform_indices = @transform_2, window_bounds = array<i64: 3, 128, 128>}, {pipeline_mode = #tpu.pipeline_mode<synchronous>, transform_indices = @transform_3, window_bounds = array<i64: 128, 128>}, {pipeline_mode = #tpu.pipeline_mode<synchronous>, transform_indices = @transform_4, window_bounds = array<i64: 4, 128>}, {pipeline_mode = #tpu.pipeline_mode<synchronous>, transform_indices = @transform_5, window_bounds = array<i64: 1, 128>}, {transform_indices = @transform_6, window_bounds = array<i64: 16, 128>}]} {
    %c0 = arith.constant 0 : index
    %c0_0 = arith.constant 0 : index
    %0 = vector.load %arg1[%c0, %c0_0] : memref<16x768xbf16, #tpu.memory_space<vmem>>, vector<16x768xbf16>
    %c0_1 = arith.constant 0 : index
    %c0_2 = arith.constant 0 : index
    %1 = vector.load %arg2[%c0_1, %c0_2] : memref<768x128xbf16, #tpu.memory_space<vmem>>, vector<768x128xbf16>
    %cst = arith.constant dense<0.000000e+00> : vector<16x128xf32>
    %2 = tpu.matmul %0, %1, %cst {dimension_numbers = #tpu.dot_dimension_numbers<[1], [0], [0], [1], [0, 0, 1, 1], [], []>} : vector<16x768xbf16>, vector<768x128xbf16>, vector<16x128xf32> -> vector<16x128xf32>
    %c0_3 = arith.constant 0 : index
    %c0_4 = arith.constant 0 : index
    %3 = vector.load %arg5[%c0_3, %c0_4] : memref<4x128xf32, #tpu.memory_space<vmem>>, vector<1x128xf32>
    %4 = vector.broadcast %3 : vector<1x128xf32> to vector<16x128xf32>
    %5 = arith.addf %2, %4 : vector<16x128xf32>
    %cst_5 = arith.constant 0.000000e+00 : f32
    %6 = vector.broadcast %cst_5 : f32 to vector<16x128xf32>
    %7 = arith.maximumf %5, %6 : vector<16x128xf32>
    %8 = arith.truncf %7 : vector<16x128xf32> to vector<16x128xbf16>
    %c0_6 = arith.constant 0 : index
    %c0_7 = arith.constant 0 : index
    %c0_8 = arith.constant 0 : index
    %9 = vector.load %arg3[%c0_6, %c0_7, %c0_8] : memref<3x128x128xbf16, #tpu.memory_space<vmem>>, vector<1x128x128xbf16>
    %10 = vector.shape_cast %9 : vector<1x128x128xbf16> to vector<128x128xbf16>
    %cst_9 = arith.constant dense<0.000000e+00> : vector<16x128xf32>
    %11 = tpu.matmul %8, %10, %cst_9 {dimension_numbers = #tpu.dot_dimension_numbers<[1], [0], [0], [1], [0, 0, 1, 1], [], []>} : vector<16x128xbf16>, vector<128x128xbf16>, vector<16x128xf32> -> vector<16x128xf32>
    %c1 = arith.constant 1 : index
    %c0_10 = arith.constant 0 : index
    %12 = vector.load %arg5[%c1, %c0_10] : memref<4x128xf32, #tpu.memory_space<vmem>>, vector<1x128xf32>
    %13 = vector.broadcast %12 : vector<1x128xf32> to vector<16x128xf32>
    %14 = arith.addf %11, %13 : vector<16x128xf32>
    %cst_11 = arith.constant 0.000000e+00 : f32
    %15 = vector.broadcast %cst_11 : f32 to vector<16x128xf32>
    %16 = arith.maximumf %14, %15 : vector<16x128xf32>
    %17 = arith.addf %16, %7 : vector<16x128xf32>
    %18 = arith.truncf %17 : vector<16x128xf32> to vector<16x128xbf16>
    %c1_12 = arith.constant 1 : index
    %c0_13 = arith.constant 0 : index
    %c0_14 = arith.constant 0 : index
    %19 = vector.load %arg3[%c1_12, %c0_13, %c0_14] : memref<3x128x128xbf16, #tpu.memory_space<vmem>>, vector<1x128x128xbf16>
    %20 = vector.shape_cast %19 : vector<1x128x128xbf16> to vector<128x128xbf16>
    %cst_15 = arith.constant dense<0.000000e+00> : vector<16x128xf32>
    %21 = tpu.matmul %18, %20, %cst_15 {dimension_numbers = #tpu.dot_dimension_numbers<[1], [0], [0], [1], [0, 0, 1, 1], [], []>} : vector<16x128xbf16>, vector<128x128xbf16>, vector<16x128xf32> -> vector<16x128xf32>
    %c2 = arith.constant 2 : index
    %c0_16 = arith.constant 0 : index
    %22 = vector.load %arg5[%c2, %c0_16] : memref<4x128xf32, #tpu.memory_space<vmem>>, vector<1x128xf32>
    %23 = vector.broadcast %22 : vector<1x128xf32> to vector<16x128xf32>
    %24 = arith.addf %21, %23 : vector<16x128xf32>
    %cst_17 = arith.constant 0.000000e+00 : f32
    %25 = vector.broadcast %cst_17 : f32 to vector<16x128xf32>
    %26 = arith.maximumf %24, %25 : vector<16x128xf32>
    %27 = arith.addf %26, %17 : vector<16x128xf32>
    %28 = arith.truncf %27 : vector<16x128xf32> to vector<16x128xbf16>
    %c2_18 = arith.constant 2 : index
    %c0_19 = arith.constant 0 : index
    %c0_20 = arith.constant 0 : index
    %29 = vector.load %arg3[%c2_18, %c0_19, %c0_20] : memref<3x128x128xbf16, #tpu.memory_space<vmem>>, vector<1x128x128xbf16>
    %30 = vector.shape_cast %29 : vector<1x128x128xbf16> to vector<128x128xbf16>
    %cst_21 = arith.constant dense<0.000000e+00> : vector<16x128xf32>
    %31 = tpu.matmul %28, %30, %cst_21 {dimension_numbers = #tpu.dot_dimension_numbers<[1], [0], [0], [1], [0, 0, 1, 1], [], []>} : vector<16x128xbf16>, vector<128x128xbf16>, vector<16x128xf32> -> vector<16x128xf32>
    %c3 = arith.constant 3 : index
    %c0_22 = arith.constant 0 : index
    %32 = vector.load %arg5[%c3, %c0_22] : memref<4x128xf32, #tpu.memory_space<vmem>>, vector<1x128xf32>
    %33 = vector.broadcast %32 : vector<1x128xf32> to vector<16x128xf32>
    %34 = arith.addf %31, %33 : vector<16x128xf32>
    %cst_23 = arith.constant 0.000000e+00 : f32
    %35 = vector.broadcast %cst_23 : f32 to vector<16x128xf32>
    %36 = arith.maximumf %34, %35 : vector<16x128xf32>
    %37 = arith.addf %36, %27 : vector<16x128xf32>
    %38 = arith.truncf %37 : vector<16x128xf32> to vector<16x128xbf16>
    %c0_24 = arith.constant 0 : index
    %c0_25 = arith.constant 0 : index
    %39 = vector.load %arg4[%c0_24, %c0_25] : memref<128x128xbf16, #tpu.memory_space<vmem>>, vector<128x128xbf16>
    %cst_26 = arith.constant dense<0.000000e+00> : vector<16x128xf32>
    %40 = tpu.matmul %38, %39, %cst_26 {dimension_numbers = #tpu.dot_dimension_numbers<[1], [0], [0], [1], [0, 0, 1, 1], [], []>} : vector<16x128xbf16>, vector<128x128xbf16>, vector<16x128xf32> -> vector<16x128xf32>
    %c0_27 = arith.constant 0 : index
    %c0_28 = arith.constant 0 : index
    %41 = vector.load %arg6[%c0_27, %c0_28] : memref<1x128xf32, #tpu.memory_space<vmem>>, vector<1x128xf32>
    %42 = vector.broadcast %41 : vector<1x128xf32> to vector<16x128xf32>
    %43 = arith.addf %40, %42 : vector<16x128xf32>
    %c0_29 = arith.constant 0 : index
    %c0_30 = arith.constant 0 : index
    %44 = vector.load %arg7[%c0_29, %c0_30] : memref<16x128xf32, #tpu.memory_space<vmem>>, vector<16x128xf32>
    tpu.vector_store %arg7[%c0_29, %c0_30], %43 {strides = array<i32>} : memref<16x128xf32, #tpu.memory_space<vmem>>, vector<16x128xf32>,
    return
  }
  func.func @transform_0(%arg0: i32) -> (i32, i32) {
    %c0_i32 = arith.constant 0 : i32
    %c0_i32_0 = arith.constant 0 : i32
    return %arg0, %c0_i32 : i32, i32
  }
  func.func @transform_1(%arg0: i32) -> (i32, i32) {
    %c0_i32 = arith.constant 0 : i32
    %c0_i32_0 = arith.constant 0 : i32
    %c0_i32_1 = arith.constant 0 : i32
    return %c0_i32, %c0_i32_0 : i32, i32
  }
  func.func @transform_2(%arg0: i32) -> (i32, i32, i32) {
    %c0_i32 = arith.constant 0 : i32
    %c0_i32_0 = arith.constant 0 : i32
    %c0_i32_1 = arith.constant 0 : i32
    %c0_i32_2 = arith.constant 0 : i32
    return %c0_i32, %c0_i32_0, %c0_i32_1 : i32, i32, i32
  }
  func.func @transform_3(%arg0: i32) -> (i32, i32) {
    %c0_i32 = arith.constant 0 : i32
    %c0_i32_0 = arith.constant 0 : i32
    %c0_i32_1 = arith.constant 0 : i32
    return %c0_i32, %c0_i32_0 : i32, i32
  }
  func.func @transform_4(%arg0: i32) -> (i32, i32) {
    %c0_i32 = arith.constant 0 : i32
    %c0_i32_0 = arith.constant 0 : i32
    %c0_i32_1 = arith.constant 0 : i32
    return %c0_i32, %c0_i32_0 : i32, i32
  }
  func.func @transform_5(%arg0: i32) -> (i32, i32) {
    %c0_i32 = arith.constant 0 : i32
    %c0_i32_0 = arith.constant 0 : i32
    %c0_i32_1 = arith.constant 0 : i32
    return %c0_i32, %c0_i32_0 : i32, i32
  }
  func.func @transform_6(%arg0: i32) -> (i32, i32) {
    %c0_i32 = arith.constant 0 : i32
    %c0_i32_0 = arith.constant 0 : i32
    return %arg0, %c0_i32 : i32, i32
  }
}

</mosaic_0001>

<llo_original>
// kernel: tpu_custom_call.1
$region0: #{tpu_custom_call.1}
  #allocation0 [shape = 'u32[]', space=smem, size = 0x4, offset = 0x4, fixed_abs, tag = 'smem constant byte address 0x4 - core index']
  #allocation1 [shape = 'u32[144,128]{1,0:T(1,128)}', space=vmem, size = 0x12000, scoped, tag = 'internal scratch']
  %s0 = inlined_call_operand.hbm [shape: bf16[2,768], index: 0, kind: input, shape index: {}]
  %s1 = inlined_call_operand.hbm [shape: bf16[768,128], index: 1, kind: input, shape index: {}]
  %s2 = inlined_call_operand.hbm [shape: bf16[3,128,128], index: 2, kind: input, shape index: {}]
  %s3 = inlined_call_operand.hbm [shape: bf16[128,128], index: 3, kind: input, shape index: {}]
  %s4 = inlined_call_operand.vmem [shape: f32[4,128], index: 4, kind: input, shape index: {}]
  %s5 = inlined_call_operand.vmem [shape: f32[1,128], index: 5, kind: input, shape index: {}]
  %s6 = inlined_call_operand.hbm [shape: f32[2,128], index: 6, kind: output, shape index: {}]
  %s7 = sld [smem:[#allocation0]]
  $region50: #{tpu_custom_call.1} parent=0
    _
  %s9 = ssub.s32 1, %s7
  %s10 = scalar_select 0, %s9, %s7
  $region1: #{tpu_custom_call.1} parent=0
    #allocation2 [shape = 'u8[24576]{0}', space=vmem, size = 0x6000, scoped, tag = 'input window, operand 0, single buffered']
    #allocation3 [shape = 's32[1]{0}', space=sflag, size = 0x4, scoped, tag = 'scoped memory for tpu_custom_call.1']
    #allocation4 [shape = 's32[1]{0}', space=sflag, size = 0x4, scoped, tag = 'scoped memory for tpu_custom_call.1']
    #allocation5 [shape = 'u8[196608]{0}', space=vmem, size = 0x30000, scoped, tag = 'input window, operand 1, single buffered']
    #allocation6 [shape = 's32[1]{0}', space=sflag, size = 0x4, scoped, tag = 'scoped memory for tpu_custom_call.1']
    #allocation7 [shape = 'u8[98304]{0}', space=vmem, size = 0x18000, scoped, tag = 'input window, operand 2, single buffered']
    #allocation8 [shape = 'u8[32768]{0}', space=vmem, size = 0x8000, scoped, tag = 'input window, operand 3, single buffered']
    #allocation9 [shape = 's32[1]{0}', space=sflag, size = 0x4, scoped, tag = 'scoped memory for tpu_custom_call.1']
    #allocation10 [shape = 'u8[8192]{0}', space=vmem, size = 0x2000, scoped, tag = 'output window, operand 0, single buffered']
    %11 = vsyncpa [#allocation3], 0
    %12 = vsyncpa [#allocation6], 0
    %13 = vsyncpa [#allocation9], 0
    %14 = vsyncpa [#allocation4], 0
    // Predicated region
    $region2: #{tpu_custom_call.1} parent=1 // pred_check
      _
    $region3: #{tpu_custom_call.1} parent=1 // pred_check_branch
      %16 = sbr.rel (0) target = $region5
    $region4: #{tpu_custom_call.1} parent=1 // pred_region
      %s18 = ssub.s32 768, 96
      %19 = vsyncadd [#allocation3], %s18
      %s20 = sshll.u32 [#allocation2], 4
      %s21 = int_to_ptr.vmem [resolvable:$true] %s20
      %26 = dma.hbm_to_vmem [thread:$0]  %s0, 96, %s21, [#allocation3], 96, 96, 6
    $region5: #{tpu_custom_call.1} parent=1 // pred_fallthru
      _
    // Predicated region
    $region6: #{tpu_custom_call.1} parent=1 // pred_check
      _
    $region7: #{tpu_custom_call.1} parent=1 // pred_check_branch
      %28 = sbr.rel (0) target = $region9
    $region8: #{tpu_custom_call.1} parent=1 // pred_region
      %s30 = ssub.s32 6144, 6144
      %31 = vsyncadd [#allocation6], %s30
      %s32 = sshll.u32 [#allocation5], 4
      %s33 = int_to_ptr.vmem [resolvable:$true] %s32
      %38 = dma.hbm_to_vmem [thread:$0]  %s1, 6144, %s33, [#allocation6], 64, 64, 4
    $region9: #{tpu_custom_call.1} parent=1 // pred_fallthru
      _
    // Predicated region
    $region10: #{tpu_custom_call.1} parent=1 // pred_check
      _
    $region11: #{tpu_custom_call.1} parent=1 // pred_check_branch
      %40 = sbr.rel (0) target = $region13
    $region12: #{tpu_custom_call.1} parent=1 // pred_region
      %s42 = ssub.s32 3072, 3072
      %43 = vsyncadd [#allocation6], %s42
      %s44 = sshll.u32 [#allocation7], 4
      %s45 = int_to_ptr.vmem [resolvable:$true] %s44
      %50 = dma.hbm_to_vmem [thread:$0]  %s2, 3072, %s45, [#allocation6], 64, 64, 4
    $region13: #{tpu_custom_call.1} parent=1 // pred_fallthru
      _
    // Predicated region
    $region14: #{tpu_custom_call.1} parent=1 // pred_check
      _
    $region15: #{tpu_custom_call.1} parent=1 // pred_check_branch
      %52 = sbr.rel (0) target = $region17
    $region16: #{tpu_custom_call.1} parent=1 // pred_region
      %s54 = ssub.s32 1024, 1024
      %55 = vsyncadd [#allocation9], %s54
      %s56 = sshll.u32 [#allocation8], 4
      %s57 = int_to_ptr.vmem [resolvable:$true] %s56
      %62 = dma.hbm_to_vmem [thread:$0]  %s3, 1024, %s57, [#allocation9], 64, 64, 4
    $region17: #{tpu_custom_call.1} parent=1 // pred_fallthru
      _
    // Predicated region
    $region18: #{tpu_custom_call.1} parent=1 // pred_check
      _
    $region19: #{tpu_custom_call.1} parent=1 // pred_check_branch
      %64 = sbr.rel (0) target = $region21
    $region20: #{tpu_custom_call.1} parent=1 // pred_region
      _
    $region21: #{tpu_custom_call.1} parent=1 // pred_fallthru
      _
    // Predicated region
    $region22: #{tpu_custom_call.1} parent=1 // pred_check
      _
    $region23: #{tpu_custom_call.1} parent=1 // pred_check_branch
      %66 = sbr.rel (0) target = $region25
    $region24: #{tpu_custom_call.1} parent=1 // pred_region
      _
    $region25: #{tpu_custom_call.1} parent=1 // pred_fallthru
      _
    // Predicated region
    $region26: #{tpu_custom_call.1} parent=1 // pred_check
      _
    $region27: #{tpu_custom_call.1} parent=1 // pred_check_branch
      %68 = sbr.rel (0) target = $region29
    $region28: #{tpu_custom_call.1} parent=1 // pred_region
      %69 = dma.done [#allocation3], 768
    $region29: #{tpu_custom_call.1} parent=1 // pred_fallthru
      _
    // Predicated region
    $region30: #{tpu_custom_call.1} parent=1 // pred_check
      _
    $region31: #{tpu_custom_call.1} parent=1 // pred_check_branch
      %71 = sbr.rel (0) target = $region33
    $region32: #{tpu_custom_call.1} parent=1 // pred_region
      %72 = dma.done [#allocation6], 6144
    $region33: #{tpu_custom_call.1} parent=1 // pred_fallthru
      _
    // Predicated region
    $region34: #{tpu_custom_call.1} parent=1 // pred_check
      _
    $region35: #{tpu_custom_call.1} parent=1 // pred_check_branch
      %74 = sbr.rel (0) target = $region37
    $region36: #{tpu_custom_call.1} parent=1 // pred_region
      %75 = dma.done [#allocation6], 3072
    $region37: #{tpu_custom_call.1} parent=1 // pred_fallthru
      _
    // Predicated region
    $region38: #{tpu_custom_call.1} parent=1 // pred_check
      _
    $region39: #{tpu_custom_call.1} parent=1 // pred_check_branch
      %77 = sbr.rel (0) target = $region41
    $region40: #{tpu_custom_call.1} parent=1 // pred_region
      %78 = dma.done [#allocation9], 1024
    $region41: #{tpu_custom_call.1} parent=1 // pred_fallthru
      _
    %v80 = vld [vmem:[#allocation2] sm:$0x3f]
    %v81 = vld [vmem:[#allocation2 + $0x6] sm:$0x3f]
    %v82 = vld [vmem:[#allocation2 + $0xc] sm:$0x3f]
    %v83 = vld [vmem:[#allocation2 + $0x12] sm:$0x3f]
    %v84 = vld [vmem:[#allocation2 + $0x18] sm:$0x3f]
    %v85 = vld [vmem:[#allocation2 + $0x1e] sm:$0x3f]
    %v86 = vld [vmem:[#allocation2 + $0x24] sm:$0x3f]
    %v87 = vld [vmem:[#allocation2 + $0x2a] sm:$0x3f]
    %v88 = vld [vmem:[#allocation5] sm:$0xf]
    %v89 = vld [vmem:[#allocation5 + $0x4] sm:$0xf]
    %v90 = vld [vmem:[#allocation5 + $0x8] sm:$0xf]
    %v91 = vld [vmem:[#allocation5 + $0xc] sm:$0xf]
    %v92 = vld [vmem:[#allocation5 + $0x10] sm:$0xf]
    %v93 = vld [vmem:[#allocation5 + $0x14] sm:$0xf]
    %v94 = vld [vmem:[#allocation5 + $0x18] sm:$0xf]
    %v95 = vld [vmem:[#allocation5 + $0x1c] sm:$0xf]
    %v96 = vld [vmem:[#allocation5 + $0x20] sm:$0xf]
    %v97 = vld [vmem:[#allocation5 + $0x24] sm:$0xf]
    %v98 = vld [vmem:[#allocation5 + $0x28] sm:$0xf]
    %v99 = vld [vmem:[#allocation5 + $0x2c] sm:$0xf]
    %v100 = vld [vmem:[#allocation5 + $0x30] sm:$0xf]
    %v101 = vld [vmem:[#allocation5 + $0x34] sm:$0xf]
    %v102 = vld [vmem:[#allocation5 + $0x38] sm:$0xf]
    %v103 = vld [vmem:[#allocation5 + $0x3c] sm:$0xf]
    %v104 = vld [vmem:[#allocation5 + $0x40] sm:$0xf]
    %v105 = vld [vmem:[#allocation5 + $0x44] sm:$0xf]
    %v106 = vld [vmem:[#allocation5 + $0x48] sm:$0xf]
    %v107 = vld [vmem:[#allocation5 + $0x4c] sm:$0xf]
    %v108 = vld [vmem:[#allocation5 + $0x50] sm:$0xf]
    %v109 = vld [vmem:[#allocation5 + $0x54] sm:$0xf]
    %v110 = vld [vmem:[#allocation5 + $0x58] sm:$0xf]
    %v111 = vld [vmem:[#allocation5 + $0x5c] sm:$0xf]
    %v112 = vld [vmem:[#allocation5 + $0x60] sm:$0xf]
    %v113 = vld [vmem:[#allocation5 + $0x64] sm:$0xf]
    %v114 = vld [vmem:[#allocation5 + $0x68] sm:$0xf]
    %v115 = vld [vmem:[#allocation5 + $0x6c] sm:$0xf]
    %v116 = vld [vmem:[#allocation5 + $0x70] sm:$0xf]
    %v117 = vld [vmem:[#allocation5 + $0x74] sm:$0xf]
    %v118 = vld [vmem:[#allocation5 + $0x78] sm:$0xf]
    %v119 = vld [vmem:[#allocation5 + $0x7c] sm:$0xf]
    %v120 = vld [vmem:[#allocation5 + $0x80] sm:$0xf]
    %v121 = vld [vmem:[#allocation5 + $0x84] sm:$0xf]
    %v122 = vld [vmem:[#allocation5 + $0x88] sm:$0xf]
    %v123 = vld [vmem:[#allocation5 + $0x8c] sm:$0xf]
    %v124 = vld [vmem:[#allocation5 + $0x90] sm:$0xf]
    %v125 = vld [vmem:[#allocation5 + $0x94] sm:$0xf]
    %v126 = vld [vmem:[#allocation5 + $0x98] sm:$0xf]
    %v127 = vld [vmem:[#allocation5 + $0x9c] sm:$0xf]
    %v128 = vld [vmem:[#allocation5 + $0xa0] sm:$0xf]
    %v129 = vld [vmem:[#allocation5 + $0xa4] sm:$0xf]
    %v130 = vld [vmem:[#allocation5 + $0xa8] sm:$0xf]
    %v131 = vld [vmem:[#allocation5 + $0xac] sm:$0xf]
    %v132 = vld [vmem:[#allocation5 + $0xb0] sm:$0xf]
    %v133 = vld [vmem:[#allocation5 + $0xb4] sm:$0xf]
    %v134 = vld [vmem:[#allocation5 + $0xb8] sm:$0xf]
    %v135 = vld [vmem:[#allocation5 + $0xbc] sm:$0xf]
    %v136 = vld [vmem:[#allocation5 + $0xc0] sm:$0xf]
    %v137 = vld [vmem:[#allocation5 + $0xc4] sm:$0xf]
    %v138 = vld [vmem:[#allocation5 + $0xc8] sm:$0xf]
    %v139 = vld [vmem:[#allocation5 + $0xcc] sm:$0xf]
    %v140 = vld [vmem:[#allocation5 + $0xd0] sm:$0xf]
    %v141 = vld [vmem:[#allocation5 + $0xd4] sm:$0xf]
    %v142 = vld [vmem:[#allocation5 + $0xd8] sm:$0xf]
    %v143 = vld [vmem:[#allocation5 + $0xdc] sm:$0xf]
    %v144 = vld [vmem:[#allocation5 + $0xe0] sm:$0xf]
    %v145 = vld [vmem:[#allocation5 + $0xe4] sm:$0xf]
    %v146 = vld [vmem:[#allocation5 + $0xe8] sm:$0xf]
    %v147 = vld [vmem:[#allocation5 + $0xec] sm:$0xf]
    %v148 = vld [vmem:[#allocation5 + $0xf0] sm:$0xf]
    %v149 = vld [vmem:[#allocation5 + $0xf4] sm:$0xf]
    %v150 = vld [vmem:[#allocation5 + $0xf8] sm:$0xf]
    %v151 = vld [vmem:[#allocation5 + $0xfc] sm:$0xf]
    %v152 = vld [vmem:[#allocation5 + $0x100] sm:$0xf]
    %v153 = vld [vmem:[#allocation5 + $0x104] sm:$0xf]
    %v154 = vld [vmem:[#allocation5 + $0x108] sm:$0xf]
    %v155 = vld [vmem:[#allocation5 + $0x10c] sm:$0xf]
    %v156 = vld [vmem:[#allocation5 + $0x110] sm:$0xf]
    %v157 = vld [vmem:[#allocation5 + $0x114] sm:$0xf]
    %v158 = vld [vmem:[#allocation5 + $0x118] sm:$0xf]
    %v159 = vld [vmem:[#allocation5 + $0x11c] sm:$0xf]
    %v160 = vld [vmem:[#allocation5 + $0x120] sm:$0xf]
    %v161 = vld [vmem:[#allocation5 + $0x124] sm:$0xf]
    %v162 = vld [vmem:[#allocation5 + $0x128] sm:$0xf]
    %v163 = vld [vmem:[#allocation5 + $0x12c] sm:$0xf]
    %v164 = vld [vmem:[#allocation5 + $0x130] sm:$0xf]
    %v165 = vld [vmem:[#allocation5 + $0x134] sm:$0xf]
    %v166 = vld [vmem:[#allocation5 + $0x138] sm:$0xf]
    %v167 = vld [vmem:[#allocation5 + $0x13c] sm:$0xf]
    %v168 = vld [vmem:[#allocation5 + $0x140] sm:$0xf]
    %v169 = vld [vmem:[#allocation5 + $0x144] sm:$0xf]
    %v170 = vld [vmem:[#allocation5 + $0x148] sm:$0xf]
    %v171 = vld [vmem:[#allocation5 + $0x14c] sm:$0xf]
    %v172 = vld [vmem:[#allocation5 + $0x150] sm:$0xf]
    %v173 = vld [vmem:[#allocation5 + $0x154] sm:$0xf]
    %v174 = vld [vmem:[#allocation5 + $0x158] sm:$0xf]
    %v175 = vld [vmem:[#allocation5 + $0x15c] sm:$0xf]
    %v176 = vld [vmem:[#allocation5 + $0x160] sm:$0xf]
    %v177 = vld [vmem:[#allocation5 + $0x164] sm:$0xf]
    %v178 = vld [vmem:[#allocation5 + $0x168] sm:$0xf]
    %v179 = vld [vmem:[#allocation5 + $0x16c] sm:$0xf]
    %v180 = vld [vmem:[#allocation5 + $0x170] sm:$0xf]
    %v181 = vld [vmem:[#allocation5 + $0x174] sm:$0xf]
    %v182 = vld [vmem:[#allocation5 + $0x178] sm:$0xf]
    %v183 = vld [vmem:[#allocation5 + $0x17c] sm:$0xf]
    %v184 = vld [vmem:[%s4] sm:$0x1]
    %v185 = vlaneseq
    %v186 = vshrl.u32 %v185, 7
    %v187 = vsub.s32 0, %v186
    %v188 = vrot.slane %v184, %v187
    %v197 = vcombine.low %v80, %v81
    %v198 = vcombine.high %v80, %v81
    %v199 = vcombine.low %v82, %v83
    %v200 = vcombine.high %v82, %v83
    %v201 = vcombine.low %v84, %v85
    %v202 = vcombine.high %v84, %v85
    %v203 = vcombine.low %v86, %v87
    %v204 = vcombine.high %v86, %v87
    %v206 = vunpack.c.l.s4 1966171168
    %v207 = vunpack.c.0.s8 %v206
    %v208 = vlaneseq
    %v209 = vshrl.u32 %v208, 7
    %v210 = vsub.s32 %v207, %v209
    %v211 = vrot.slane %v197, %v210
    %v213 = vunpack.c.l.s4 1966171168
    %v214 = vunpack.c.0.s8 %v213
    %v215 = vlaneseq
    %v216 = vshrl.u32 %v215, 7
    %v217 = vsub.s32 %v214, %v216
    %v218 = vrot.slane %v198, %v217
    %v220 = vunpack.c.l.s4 1966171168
    %v221 = vunpack.c.0.s8 %v220
    %v222 = vlaneseq
    %v223 = vshrl.u32 %v222, 7
    %v224 = vsub.s32 %v221, %v223
    %v225 = vrot.slane %v199, %v224
    %v227 = vunpack.c.l.s4 1966171168
    %v228 = vunpack.c.0.s8 %v227
    %v229 = vlaneseq
    %v230 = vshrl.u32 %v229, 7
    %v231 = vsub.s32 %v228, %v230
    %v232 = vrot.slane %v200, %v231
    %v234 = vunpack.c.l.s4 1966171168
    %v235 = vunpack.c.0.s8 %v234
    %v236 = vlaneseq
    %v237 = vshrl.u32 %v236, 7
    %v238 = vsub.s32 %v235, %v237
    %v239 = vrot.slane %v201, %v238
    %v241 = vunpack.c.l.s4 1966171168
    %v242 = vunpack.c.0.s8 %v241
    %v243 = vlaneseq
    %v244 = vshrl.u32 %v243, 7
    %v245 = vsub.s32 %v242, %v244
    %v246 = vrot.slane %v202, %v245
    %v248 = vunpack.c.l.s4 1966171168
    %v249 = vunpack.c.0.s8 %v248
    %v250 = vlaneseq
    %v251 = vshrl.u32 %v250, 7
    %v252 = vsub.s32 %v249, %v251
    %v253 = vrot.slane %v203, %v252
    %v255 = vunpack.c.l.s4 1966171168
    %v256 = vunpack.c.0.s8 %v255
    %v257 = vlaneseq
    %v258 = vshrl.u32 %v257, 7
    %v259 = vsub.s32 %v256, %v258
    %v260 = vrot.slane %v204, %v259
    %v261 = vcombine.low %v211, %v225
    %v262 = vcombine.high %v211, %v225
    %v263 = vcombine.low %v218, %v232
    %v264 = vcombine.high %v218, %v232
    %v265 = vcombine.low %v239, %v253
    %v266 = vcombine.high %v239, %v253
    %v267 = vcombine.low %v246, %v260
    %v268 = vcombine.high %v246, %v260
    %v270 = vunpack.c.l.s4 1966171168
    %v271 = vunpack.c.0.s8 %v270
    %v272 = vlaneseq
    %v273 = vshrl.u32 %v272, 7
    %v274 = vsub.s32 %v271, %v273
    %v275 = vrot.slane %v261, %v274
    %v277 = vunpack.c.l.s4 1966171168
    %v278 = vunpack.c.0.s8 %v277
    %v279 = vlaneseq
    %v280 = vshrl.u32 %v279, 7
    %v281 = vsub.s32 %v278, %v280
    %v282 = vrot.slane %v263, %v281
    %v284 = vunpack.c.l.s4 1966171168
    %v285 = vunpack.c.0.s8 %v284
    %v286 = vlaneseq
    %v287 = vshrl.u32 %v286, 7
    %v288 = vsub.s32 %v285, %v287
    %v289 = vrot.slane %v262, %v288
    %v291 = vunpack.c.l.s4 1966171168
    %v292 = vunpack.c.0.s8 %v291
    %v293 = vlaneseq
    %v294 = vshrl.u32 %v293, 7
    %v295 = vsub.s32 %v292, %v294
    %v296 = vrot.slane %v264, %v295
    %v298 = vunpack.c.l.s4 1966171168
    %v299 = vunpack.c.0.s8 %v298
    %v300 = vlaneseq
    %v301 = vshrl.u32 %v300, 7
    %v302 = vsub.s32 %v299, %v301
    %v303 = vrot.slane %v265, %v302
    %v305 = vunpack.c.l.s4 1966171168
    %v306 = vunpack.c.0.s8 %v305
    %v307 = vlaneseq
    %v308 = vshrl.u32 %v307, 7
    %v309 = vsub.s32 %v306, %v308
    %v310 = vrot.slane %v267, %v309
    %v312 = vunpack.c.l.s4 1966171168
    %v313 = vunpack.c.0.s8 %v312
    %v314 = vlaneseq
    %v315 = vshrl.u32 %v314, 7
    %v316 = vsub.s32 %v313, %v315
    %v317 = vrot.slane %v266, %v316
    %v319 = vunpack.c.l.s4 1966171168
    %v320 = vunpack.c.0.s8 %v319
    %v321 = vlaneseq
    %v322 = vshrl.u32 %v321, 7
    %v323 = vsub.s32 %v320, %v322
    %v324 = vrot.slane %v268, %v323
    %v325 = vcombine.low %v275, %v303
    %v326 = vcombine.high %v275, %v303
    %v327 = vcombine.low %v282, %v310
    %v328 = vcombine.low %v289, %v317
    %v329 = vcombine.high %v289, %v317
    %v330 = vcombine.low %v296, %v324
    %v433 = vunpack.c.l.b16 %v88
    %v434 = vunpack.c.l.b16 %v89
    %v435 = vunpack.c.l.b16 %v90
    %v436 = vunpack.c.l.b16 %v91
    %v437 = vunpack.c.l.b16 %v92
    %v438 = vunpack.c.l.b16 %v93
    %v439 = vunpack.c.l.b16 %v94
    %v440 = vunpack.c.l.b16 %v95
    %v441 = vunpack.c.l.b16 %v96
    %v442 = vunpack.c.l.b16 %v97
    %v443 = vunpack.c.l.b16 %v98
    %v444 = vunpack.c.l.b16 %v99
    %v445 = vunpack.c.l.b16 %v100
    %v446 = vunpack.c.l.b16 %v101
    %v447 = vunpack.c.l.b16 %v102
    %v448 = vunpack.c.l.b16 %v103
    %v449 = vunpack.c.l.b16 %v104
    %v450 = vunpack.c.l.b16 %v105
    %v451 = vunpack.c.l.b16 %v106
    %v452 = vunpack.c.l.b16 %v107
    %v453 = vunpack.c.l.b16 %v108
    %v454 = vunpack.c.l.b16 %v109
    %v455 = vunpack.c.l.b16 %v110
    %v456 = vunpack.c.l.b16 %v111
    %v457 = vunpack.c.l.b16 %v112
    %v458 = vunpack.c.l.b16 %v113
    %v459 = vunpack.c.l.b16 %v114
    %v460 = vunpack.c.l.b16 %v115
    %v461 = vunpack.c.l.b16 %v116
    %v462 = vunpack.c.l.b16 %v117
    %v463 = vunpack.c.l.b16 %v118
    %v464 = vunpack.c.l.b16 %v119
    %v465 = vunpack.c.l.b16 %v120
    %v466 = vunpack.c.l.b16 %v121
    %v467 = vunpack.c.l.b16 %v122
    %v468 = vunpack.c.l.b16 %v123
    %v469 = vunpack.c.l.b16 %v124
    %v470 = vunpack.c.l.b16 %v125
    %v471 = vunpack.c.l.b16 %v126
    %v472 = vunpack.c.l.b16 %v127
    %v473 = vunpack.c.l.b16 %v128
    %v474 = vunpack.c.l.b16 %v129
    %v475 = vunpack.c.l.b16 %v130
    %v476 = vunpack.c.l.b16 %v131
    %v477 = vunpack.c.l.b16 %v132
    %v478 = vunpack.c.l.b16 %v133
    %v479 = vunpack.c.l.b16 %v134
    %v480 = vunpack.c.l.b16 %v135
    %v481 = vunpack.c.l.b16 %v136
    %v482 = vunpack.c.l.b16 %v137
    %v483 = vunpack.c.l.b16 %v138
    %v484 = vunpack.c.l.b16 %v139
    %v485 = vunpack.c.l.b16 %v140
    %v486 = vunpack.c.l.b16 %v141
    %v487 = vunpack.c.l.b16 %v142
    %v488 = vunpack.c.l.b16 %v143
    %v489 = vunpack.c.l.b16 %v144
    %v490 = vunpack.c.l.b16 %v145
    %v491 = vunpack.c.l.b16 %v146
    %v492 = vunpack.c.l.b16 %v147
    %v493 = vunpack.c.l.b16 %v148
    %v494 = vunpack.c.l.b16 %v149
    %v495 = vunpack.c.l.b16 %v150
    %v496 = vunpack.c.l.b16 %v151
    %v497 = vunpack.c.l.b16 %v152
    %v498 = vunpack.c.l.b16 %v153
    %v499 = vunpack.c.l.b16 %v154
    %v500 = vunpack.c.l.b16 %v155
    %v501 = vunpack.c.l.b16 %v156
    %v502 = vunpack.c.l.b16 %v157
    %v503 = vunpack.c.l.b16 %v158
    %v504 = vunpack.c.l.b16 %v159
    %v505 = vunpack.c.l.b16 %v160
    %v506 = vunpack.c.l.b16 %v161
    %v507 = vunpack.c.l.b16 %v162
    %v508 = vunpack.c.l.b16 %v163
    %v509 = vunpack.c.l.b16 %v164
    %v510 = vunpack.c.l.b16 %v165
    %v511 = vunpack.c.l.b16 %v166
    %v512 = vunpack.c.l.b16 %v167
    %v513 = vunpack.c.l.b16 %v168
    %v514 = vunpack.c.l.b16 %v169
    %v515 = vunpack.c.l.b16 %v170
    %v516 = vunpack.c.l.b16 %v171
    %v517 = vunpack.c.l.b16 %v172
    %v518 = vunpack.c.l.b16 %v173
    %v519 = vunpack.c.l.b16 %v174
    %v520 = vunpack.c.l.b16 %v175
    %v521 = vunpack.c.l.b16 %v176
    %v522 = vunpack.c.l.b16 %v177
    %v523 = vunpack.c.l.b16 %v178
    %v524 = vunpack.c.l.b16 %v179
    %v525 = vunpack.c.l.b16 %v180
    %v526 = vunpack.c.l.b16 %v181
    %v527 = vunpack.c.l.b16 %v182
    %v528 = vunpack.c.l.b16 %v183
    %v529 = vpack.c.b16 %v434, %v433
    %v530 = vpack.c.b16 %v436, %v435
    %v531 = vpack.c.b16 %v438, %v437
    %v532 = vpack.c.b16 %v440, %v439
    %v533 = vpack.c.b16 %v442, %v441
    %v534 = vpack.c.b16 %v444, %v443
    %v535 = vpack.c.b16 %v446, %v445
    %v536 = vpack.c.b16 %v448, %v447
    %v537 = vpack.c.b16 %v450, %v449
    %v538 = vpack.c.b16 %v452, %v451
    %v539 = vpack.c.b16 %v454, %v453
    %v540 = vpack.c.b16 %v456, %v455
    %v541 = vpack.c.b16 %v458, %v457
    %v542 = vpack.c.b16 %v460, %v459
    %v543 = vpack.c.b16 %v462, %v461
    %v544 = vpack.c.b16 %v464, %v463
    %v545 = vpack.c.b16 %v466, %v465
    %v546 = vpack.c.b16 %v468, %v467
    %v547 = vpack.c.b16 %v470, %v469
    %v548 = vpack.c.b16 %v472, %v471
    %v549 = vpack.c.b16 %v474, %v473
    %v550 = vpack.c.b16 %v476, %v475
    %v551 = vpack.c.b16 %v478, %v477
    %v552 = vpack.c.b16 %v480, %v479
    %v553 = vpack.c.b16 %v482, %v481
    %v554 = vpack.c.b16 %v484, %v483
    %v555 = vpack.c.b16 %v486, %v485
    %v556 = vpack.c.b16 %v488, %v487
    %v557 = vpack.c.b16 %v490, %v489
    %v558 = vpack.c.b16 %v492, %v491
    %v559 = vpack.c.b16 %v494, %v493
    %v560 = vpack.c.b16 %v496, %v495
    %v561 = vpack.c.b16 %v498, %v497
    %v562 = vpack.c.b16 %v500, %v499
    %v563 = vpack.c.b16 %v502, %v501
    %v564 = vpack.c.b16 %v504, %v503
    %v565 = vpack.c.b16 %v506, %v505
    %v566 = vpack.c.b16 %v508, %v507
    %v567 = vpack.c.b16 %v510, %v509
    %v568 = vpack.c.b16 %v512, %v511
    %v569 = vpack.c.b16 %v514, %v513
    %v570 = vpack.c.b16 %v516, %v515
    %v571 = vpack.c.b16 %v518, %v517
    %v572 = vpack.c.b16 %v520, %v519
    %v573 = vpack.c.b16 %v522, %v521
    %v574 = vpack.c.b16 %v524, %v523
    %v575 = vpack.c.b16 %v526, %v525
    %v576 = vpack.c.b16 %v528, %v527
    %625 = vmatprep.subr.bf16.mxu0 0
    %626 = vmatpush1.bf16.msra.mxu0 %v529
    %627 = vmatprep.subr.bf16.mxu0 0
    %628 = vmatpush1.bf16.msra.mxu0 %v530
    %629 = vmatprep.subr.bf16.mxu0 0
    %630 = vmatpush1.bf16.msra.mxu0 %v531
    %631 = vmatprep.subr.bf16.mxu0 0
    %632 = vmatpush1.bf16.msra.mxu0 %v532
    %633 = vmatprep.subr.bf16.mxu0 0
    %634 = vmatpush1.bf16.msra.mxu0 %v533
    %635 = vmatprep.subr.bf16.mxu0 0
    %636 = vmatpush1.bf16.msra.mxu0 %v534
    %637 = vmatprep.subr.bf16.mxu0 0
    %638 = vmatpush1.bf16.msra.mxu0 %v535
    %639 = vmatprep.subr.bf16.mxu0 0
    %640 = vmatpush1.bf16.msra.mxu0 %v536
    %641 = vmatprep.subr.bf16.mxu0 0
    %642 = vmatpush1.bf16.msra.mxu0 %v537
    %643 = vmatprep.subr.bf16.mxu0 0
    %644 = vmatpush1.bf16.msra.mxu0 %v538
    %645 = vmatprep.subr.bf16.mxu0 0
    %646 = vmatpush1.bf16.msra.mxu0 %v539
    %647 = vmatprep.subr.bf16.mxu0 0
    %648 = vmatpush1.bf16.msra.mxu0 %v540
    %649 = vmatprep.subr.bf16.mxu0 0
    %650 = vmatpush1.bf16.msra.mxu0 %v541
    %651 = vmatprep.subr.bf16.mxu0 0
    %652 = vmatpush1.bf16.msra.mxu0 %v542
    %653 = vmatprep.subr.bf16.mxu0 0
    %654 = vmatpush1.bf16.msra.mxu0 %v543
    %655 = vmatprep.subr.bf16.mxu0 0
    %656 = vmatpush1.bf16.msra.mxu0 %v544
    %657 = vmatprep.mubr.bf16.mxu0 %v328
    %658 = vmatmul.mubr.bf16.gmra.mrb[0].mxu0 %v325
    %v659 = vpop.f32.mrb[0].mxu0
    %v660 = vadd.f32 %v188, %v659
    %v661 = vpop.f32.mrb[0].mxu0
    %v662 = vpop.f32.mrb[0].mxu0
    %v663 = vadd.f32 %v188, %v662
    %v664 = vpop.f32.mrb[0].mxu0
    %665 = vdwg.mxu0
    %666 = vmatprep.subr.bf16.mxu0 0
    %667 = vmatpush1.bf16.msra.mxu0 %v545
    %668 = vmatprep.subr.bf16.mxu0 0
    %669 = vmatpush1.bf16.msra.mxu0 %v546
    %670 = vmatprep.subr.bf16.mxu0 0
    %671 = vmatpush1.bf16.msra.mxu0 %v547
    %672 = vmatprep.subr.bf16.mxu0 0
    %673 = vmatpush1.bf16.msra.mxu0 %v548
    %674 = vmatprep.subr.bf16.mxu0 0
    %675 = vmatpush1.bf16.msra.mxu0 %v549
    %676 = vmatprep.subr.bf16.mxu0 0
    %677 = vmatpush1.bf16.msra.mxu0 %v550
    %678 = vmatprep.subr.bf16.mxu0 0
    %679 = vmatpush1.bf16.msra.mxu0 %v551
    %680 = vmatprep.subr.bf16.mxu0 0
    %681 = vmatpush1.bf16.msra.mxu0 %v552
    %682 = vmatprep.subr.bf16.mxu0 0
    %683 = vmatpush1.bf16.msra.mxu0 %v553
    %684 = vmatprep.subr.bf16.mxu0 0
    %685 = vmatpush1.bf16.msra.mxu0 %v554
    %686 = vmatprep.subr.bf16.mxu0 0
    %687 = vmatpush1.bf16.msra.mxu0 %v555
    %688 = vmatprep.subr.bf16.mxu0 0
    %689 = vmatpush1.bf16.msra.mxu0 %v556
    %690 = vmatprep.subr.bf16.mxu0 0
    %691 = vmatpush1.bf16.msra.mxu0 %v557
    %692 = vmatprep.subr.bf16.mxu0 0
    %693 = vmatpush1.bf16.msra.mxu0 %v558
    %694 = vmatprep.subr.bf16.mxu0 0
    %695 = vmatpush1.bf16.msra.mxu0 %v559
    %696 = vmatprep.subr.bf16.mxu0 0
    %697 = vmatpush1.bf16.msra.mxu0 %v560
    %698 = vmatprep.mubr.bf16.mxu0 %v329
    %699 = vmatmul.mubr.bf16.gmra.mrb[0].mxu0 %v326
    %v700 = vpop.f32.mrb[0].mxu0
    %v701 = vadd.f32 %v660, %v700
    %v702 = vpop.f32.mrb[0].mxu0
    %v703 = vpop.f32.mrb[0].mxu0
    %v704 = vadd.f32 %v663, %v703
    %v705 = vpop.f32.mrb[0].mxu0
    %706 = vdwg.mxu0
    %707 = vmatprep.subr.bf16.mxu0 0
    %708 = vmatpush1.bf16.msra.mxu0 %v561
    %709 = vmatprep.subr.bf16.mxu0 0
    %710 = vmatpush1.bf16.msra.mxu0 %v562
    %711 = vmatprep.subr.bf16.mxu0 0
    %712 = vmatpush1.bf16.msra.mxu0 %v563
    %713 = vmatprep.subr.bf16.mxu0 0
    %714 = vmatpush1.bf16.msra.mxu0 %v564
    %715 = vmatprep.subr.bf16.mxu0 0
    %716 = vmatpush1.bf16.msra.mxu0 %v565
    %717 = vmatprep.subr.bf16.mxu0 0
    %718 = vmatpush1.bf16.msra.mxu0 %v566
    %719 = vmatprep.subr.bf16.mxu0 0
    %720 = vmatpush1.bf16.msra.mxu0 %v567
    %721 = vmatprep.subr.bf16.mxu0 0
    %722 = vmatpush1.bf16.msra.mxu0 %v568
    %723 = vmatprep.subr.bf16.mxu0 0
    %724 = vmatpush1.bf16.msra.mxu0 %v569
    %725 = vmatprep.subr.bf16.mxu0 0
    %726 = vmatpush1.bf16.msra.mxu0 %v570
    %727 = vmatprep.subr.bf16.mxu0 0
    %728 = vmatpush1.bf16.msra.mxu0 %v571
    %729 = vmatprep.subr.bf16.mxu0 0
    %730 = vmatpush1.bf16.msra.mxu0 %v572
    %731 = vmatprep.subr.bf16.mxu0 0
    %732 = vmatpush1.bf16.msra.mxu0 %v573
    %733 = vmatprep.subr.bf16.mxu0 0
    %734 = vmatpush1.bf16.msra.mxu0 %v574
    %735 = vmatprep.subr.bf16.mxu0 0
    %736 = vmatpush1.bf16.msra.mxu0 %v575
    %737 = vmatprep.subr.bf16.mxu0 0
    %738 = vmatpush1.bf16.msra.mxu0 %v576
    %739 = vmatprep.mubr.bf16.mxu0 %v330
    %740 = vmatmul.mubr.bf16.gmra.mrb[0].mxu0 %v327
    %v741 = vpop.f32.mrb[0].mxu0
    %v742 = vadd.f32 %v701, %v741
    %v743 = vpop.f32.mrb[0].mxu0
    %v744 = vpop.f32.mrb[0].mxu0
    %v745 = vadd.f32 %v704, %v744
    %v746 = vpop.f32.mrb[0].mxu0
    %747 = vdwg.mxu0
    %v748 = vmax.f32 %v742, 0.0
    %v749 = vmax.f32 %v745, 0.0
    %v750 = vpack.c.bf16 %v749, %v748
    %v751 = vld [vmem:[#allocation7] sm:$0xf]
    %v752 = vld [vmem:[#allocation7 + $0x4] sm:$0xf]
    %v753 = vld [vmem:[#allocation7 + $0x8] sm:$0xf]
    %v754 = vld [vmem:[#allocation7 + $0xc] sm:$0xf]
    %v755 = vld [vmem:[#allocation7 + $0x10] sm:$0xf]
    %v756 = vld [vmem:[#allocation7 + $0x14] sm:$0xf]
    %v757 = vld [vmem:[#allocation7 + $0x18] sm:$0xf]
    %v758 = vld [vmem:[#allocation7 + $0x1c] sm:$0xf]
    %v759 = vld [vmem:[#allocation7 + $0x20] sm:$0xf]
    %v760 = vld [vmem:[#allocation7 + $0x24] sm:$0xf]
    %v761 = vld [vmem:[#allocation7 + $0x28] sm:$0xf]
    %v762 = vld [vmem:[#allocation7 + $0x2c] sm:$0xf]
    %v763 = vld [vmem:[#allocation7 + $0x30] sm:$0xf]
    %v764 = vld [vmem:[#allocation7 + $0x34] sm:$0xf]
    %v765 = vld [vmem:[#allocation7 + $0x38] sm:$0xf]
    %v766 = vld [vmem:[#allocation7 + $0x3c] sm:$0xf]
    %v767 = vld [vmem:[%s4 + $0x1] sm:$0x1]
    %v768 = vlaneseq
    %v769 = vshrl.u32 %v768, 7
    %v770 = vsub.s32 0, %v769
    %v771 = vrot.slane %v767, %v770
    %v788 = vunpack.c.l.b16 %v751
    %v789 = vunpack.c.l.b16 %v752
    %v790 = vunpack.c.l.b16 %v753
    %v791 = vunpack.c.l.b16 %v754
    %v792 = vunpack.c.l.b16 %v755
    %v793 = vunpack.c.l.b16 %v756
    %v794 = vunpack.c.l.b16 %v757
    %v795 = vunpack.c.l.b16 %v758
    %v796 = vunpack.c.l.b16 %v759
    %v797 = vunpack.c.l.b16 %v760
    %v798 = vunpack.c.l.b16 %v761
    %v799 = vunpack.c.l.b16 %v762
    %v800 = vunpack.c.l.b16 %v763
    %v801 = vunpack.c.l.b16 %v764
    %v802 = vunpack.c.l.b16 %v765
    %v803 = vunpack.c.l.b16 %v766
    %v804 = vpack.c.b16 %v789, %v788
    %v805 = vpack.c.b16 %v791, %v790
    %v806 = vpack.c.b16 %v793, %v792
    %v807 = vpack.c.b16 %v795, %v794
    %v808 = vpack.c.b16 %v797, %v796
    %v809 = vpack.c.b16 %v799, %v798
    %v810 = vpack.c.b16 %v801, %v800
    %v811 = vpack.c.b16 %v803, %v802
    %820 = vmatprep.subr.bf16.mxu0 0
    %821 = vmatpush1.bf16.msra.mxu0 %v804
    %822 = vmatprep.subr.bf16.mxu0 0
    %823 = vmatpush1.bf16.msra.mxu0 %v805
    %824 = vmatprep.subr.bf16.mxu0 0
    %825 = vmatpush1.bf16.msra.mxu0 %v806
    %826 = vmatprep.subr.bf16.mxu0 0
    %827 = vmatpush1.bf16.msra.mxu0 %v807
    %828 = vmatprep.subr.bf16.mxu0 0
    %829 = vmatpush1.bf16.msra.mxu0 %v808
    %830 = vmatprep.subr.bf16.mxu0 0
    %831 = vmatpush1.bf16.msra.mxu0 %v809
    %832 = vmatprep.subr.bf16.mxu0 0
    %833 = vmatpush1.bf16.msra.mxu0 %v810
    %834 = vmatprep.subr.bf16.mxu0 0
    %835 = vmatpush1.bf16.msra.mxu0 %v811
    %836 = vmatprep.subr.bf16.mxu0 0
    %837 = vmatpush1.bf16.msra.mxu0 0
    %838 = vmatprep.subr.bf16.mxu0 0
    %839 = vmatpush1.bf16.msra.mxu0 0
    %840 = vmatprep.subr.bf16.mxu0 0
    %841 = vmatpush1.bf16.msra.mxu0 0
    %842 = vmatprep.subr.bf16.mxu0 0
    %843 = vmatpush1.bf16.msra.mxu0 0
    %844 = vmatprep.subr.bf16.mxu0 0
    %845 = vmatpush1.bf16.msra.mxu0 0
    %846 = vmatprep.subr.bf16.mxu0 0
    %847 = vmatpush1.bf16.msra.mxu0 0
    %848 = vmatprep.subr.bf16.mxu0 0
    %849 = vmatpush1.bf16.msra.mxu0 0
    %850 = vmatprep.subr.bf16.mxu0 0
    %851 = vmatpush1.bf16.msra.mxu0 0
    %852 = vmatprep.mubr.bf16.mxu0 0
    %853 = vmatmul.mubr.bf16.gmra.mrb[0].mxu0 %v750
    %v854 = vpop.f32.mrb[0].mxu0
    %v855 = vadd.f32 %v771, %v854
    %v856 = vpop.f32.mrb[0].mxu0
    %v857 = vpop.f32.mrb[0].mxu0
    %v858 = vadd.f32 %v771, %v857
    %v859 = vpop.f32.mrb[0].mxu0
    %860 = vdwg.mxu0
    %v861 = vmax.f32 %v855, 0.0
    %v862 = vmax.f32 %v858, 0.0
    %v863 = vadd.f32 %v861, %v748
    %v864 = vadd.f32 %v862, %v749
    %v865 = vpack.c.bf16 %v864, %v863
    %s866 = scalar_lea.vmem [#allocation7], 64
    %v867 = vld [vmem:[%s866] sm:$0xf]
    %v868 = vld [vmem:[%s866 + $0x4] sm:$0xf]
    %v869 = vld [vmem:[%s866 + $0x8] sm:$0xf]
    %v870 = vld [vmem:[%s866 + $0xc] sm:$0xf]
    %v871 = vld [vmem:[%s866 + $0x10] sm:$0xf]
    %v872 = vld [vmem:[%s866 + $0x14] sm:$0xf]
    %v873 = vld [vmem:[%s866 + $0x18] sm:$0xf]
    %v874 = vld [vmem:[%s866 + $0x1c] sm:$0xf]
    %v875 = vld [vmem:[%s866 + $0x20] sm:$0xf]
    %v876 = vld [vmem:[%s866 + $0x24] sm:$0xf]
    %v877 = vld [vmem:[%s866 + $0x28] sm:$0xf]
    %v878 = vld [vmem:[%s866 + $0x2c] sm:$0xf]
    %v879 = vld [vmem:[%s866 + $0x30] sm:$0xf]
    %v880 = vld [vmem:[%s866 + $0x34] sm:$0xf]
    %v881 = vld [vmem:[%s866 + $0x38] sm:$0xf]
    %v882 = vld [vmem:[%s866 + $0x3c] sm:$0xf]
    %v883 = vld [vmem:[%s4 + $0x2] sm:$0x1]
    %v884 = vlaneseq
    %v885 = vshrl.u32 %v884, 7
    %v886 = vsub.s32 0, %v885
    %v887 = vrot.slane %v883, %v886
    %v904 = vunpack.c.l.b16 %v867
    %v905 = vunpack.c.l.b16 %v868
    %v906 = vunpack.c.l.b16 %v869
    %v907 = vunpack.c.l.b16 %v870
    %v908 = vunpack.c.l.b16 %v871
    %v909 = vunpack.c.l.b16 %v872
    %v910 = vunpack.c.l.b16 %v873
    %v911 = vunpack.c.l.b16 %v874
    %v912 = vunpack.c.l.b16 %v875
    %v913 = vunpack.c.l.b16 %v876
    %v914 = vunpack.c.l.b16 %v877
    %v915 = vunpack.c.l.b16 %v878
    %v916 = vunpack.c.l.b16 %v879
    %v917 = vunpack.c.l.b16 %v880
    %v918 = vunpack.c.l.b16 %v881
    %v919 = vunpack.c.l.b16 %v882
    %v920 = vpack.c.b16 %v905, %v904
    %v921 = vpack.c.b16 %v907, %v906
    %v922 = vpack.c.b16 %v909, %v908
    %v923 = vpack.c.b16 %v911, %v910
    %v924 = vpack.c.b16 %v913, %v912
    %v925 = vpack.c.b16 %v915, %v914
    %v926 = vpack.c.b16 %v917, %v916
    %v927 = vpack.c.b16 %v919, %v918
    %936 = vmatprep.subr.bf16.mxu0 0
    %937 = vmatpush1.bf16.msra.mxu0 %v920
    %938 = vmatprep.subr.bf16.mxu0 0
    %939 = vmatpush1.bf16.msra.mxu0 %v921
    %940 = vmatprep.subr.bf16.mxu0 0
    %941 = vmatpush1.bf16.msra.mxu0 %v922
    %942 = vmatprep.subr.bf16.mxu0 0
    %943 = vmatpush1.bf16.msra.mxu0 %v923
    %944 = vmatprep.subr.bf16.mxu0 0
    %945 = vmatpush1.bf16.msra.mxu0 %v924
    %946 = vmatprep.subr.bf16.mxu0 0
    %947 = vmatpush1.bf16.msra.mxu0 %v925
    %948 = vmatprep.subr.bf16.mxu0 0
    %949 = vmatpush1.bf16.msra.mxu0 %v926
    %950 = vmatprep.subr.bf16.mxu0 0
    %951 = vmatpush1.bf16.msra.mxu0 %v927
    %952 = vmatprep.subr.bf16.mxu0 0
    %953 = vmatpush1.bf16.msra.mxu0 0
    %954 = vmatprep.subr.bf16.mxu0 0
    %955 = vmatpush1.bf16.msra.mxu0 0
    %956 = vmatprep.subr.bf16.mxu0 0
    %957 = vmatpush1.bf16.msra.mxu0 0
    %958 = vmatprep.subr.bf16.mxu0 0
    %959 = vmatpush1.bf16.msra.mxu0 0
    %960 = vmatprep.subr.bf16.mxu0 0
    %961 = vmatpush1.bf16.msra.mxu0 0
    %962 = vmatprep.subr.bf16.mxu0 0
    %963 = vmatpush1.bf16.msra.mxu0 0
    %964 = vmatprep.subr.bf16.mxu0 0
    %965 = vmatpush1.bf16.msra.mxu0 0
    %966 = vmatprep.subr.bf16.mxu0 0
    %967 = vmatpush1.bf16.msra.mxu0 0
    %968 = vmatprep.mubr.bf16.mxu0 0
    %969 = vmatmul.mubr.bf16.gmra.mrb[0].mxu0 %v865
    %v970 = vpop.f32.mrb[0].mxu0
    %v971 = vadd.f32 %v887, %v970
    %v972 = vpop.f32.mrb[0].mxu0
    %v973 = vpop.f32.mrb[0].mxu0
    %v974 = vadd.f32 %v887, %v973
    %v975 = vpop.f32.mrb[0].mxu0
    %976 = vdwg.mxu0
    %v977 = vmax.f32 %v971, 0.0
    %v978 = vmax.f32 %v974, 0.0
    %v979 = vadd.f32 %v977, %v863
    %v980 = vadd.f32 %v978, %v864
    %v981 = vpack.c.bf16 %v980, %v979
    %s982 = scalar_lea.vmem [#allocation7], 128
    %v983 = vld [vmem:[%s982] sm:$0xf]
    %v984 = vld [vmem:[%s982 + $0x4] sm:$0xf]
    %v985 = vld [vmem:[%s982 + $0x8] sm:$0xf]
    %v986 = vld [vmem:[%s982 + $0xc] sm:$0xf]
    %v987 = vld [vmem:[%s982 + $0x10] sm:$0xf]
    %v988 = vld [vmem:[%s982 + $0x14] sm:$0xf]
    %v989 = vld [vmem:[%s982 + $0x18] sm:$0xf]
    %v990 = vld [vmem:[%s982 + $0x1c] sm:$0xf]
    %v991 = vld [vmem:[%s982 + $0x20] sm:$0xf]
    %v992 = vld [vmem:[%s982 + $0x24] sm:$0xf]
    %v993 = vld [vmem:[%s982 + $0x28] sm:$0xf]
    %v994 = vld [vmem:[%s982 + $0x2c] sm:$0xf]
    %v995 = vld [vmem:[%s982 + $0x30] sm:$0xf]
    %v996 = vld [vmem:[%s982 + $0x34] sm:$0xf]
    %v997 = vld [vmem:[%s982 + $0x38] sm:$0xf]
    %v998 = vld [vmem:[%s982 + $0x3c] sm:$0xf]
    %v999 = vld [vmem:[%s4 + $0x3] sm:$0x1]
    %v1000 = vlaneseq
    %v1001 = vshrl.u32 %v1000, 7
    %v1002 = vsub.s32 0, %v1001
    %v1003 = vrot.slane %v999, %v1002
    %v1020 = vunpack.c.l.b16 %v983
    %v1021 = vunpack.c.l.b16 %v984
    %v1022 = vunpack.c.l.b16 %v985
    %v1023 = vunpack.c.l.b16 %v986
    %v1024 = vunpack.c.l.b16 %v987
    %v1025 = vunpack.c.l.b16 %v988
    %v1026 = vunpack.c.l.b16 %v989
    %v1027 = vunpack.c.l.b16 %v990
    %v1028 = vunpack.c.l.b16 %v991
    %v1029 = vunpack.c.l.b16 %v992
    %v1030 = vunpack.c.l.b16 %v993
    %v1031 = vunpack.c.l.b16 %v994
    %v1032 = vunpack.c.l.b16 %v995
    %v1033 = vunpack.c.l.b16 %v996
    %v1034 = vunpack.c.l.b16 %v997
    %v1035 = vunpack.c.l.b16 %v998
    %v1036 = vpack.c.b16 %v1021, %v1020
    %v1037 = vpack.c.b16 %v1023, %v1022
    %v1038 = vpack.c.b16 %v1025, %v1024
    %v1039 = vpack.c.b16 %v1027, %v1026
    %v1040 = vpack.c.b16 %v1029, %v1028
    %v1041 = vpack.c.b16 %v1031, %v1030
    %v1042 = vpack.c.b16 %v1033, %v1032
    %v1043 = vpack.c.b16 %v1035, %v1034
    %1052 = vmatprep.subr.bf16.mxu0 0
    %1053 = vmatpush1.bf16.msra.mxu0 %v1036
    %1054 = vmatprep.subr.bf16.mxu0 0
    %1055 = vmatpush1.bf16.msra.mxu0 %v1037
    %1056 = vmatprep.subr.bf16.mxu0 0
    %1057 = vmatpush1.bf16.msra.mxu0 %v1038
    %1058 = vmatprep.subr.bf16.mxu0 0
    %1059 = vmatpush1.bf16.msra.mxu0 %v1039
    %1060 = vmatprep.subr.bf16.mxu0 0
    %1061 = vmatpush1.bf16.msra.mxu0 %v1040
    %1062 = vmatprep.subr.bf16.mxu0 0
    %1063 = vmatpush1.bf16.msra.mxu0 %v1041
    %1064 = vmatprep.subr.bf16.mxu0 0
    %1065 = vmatpush1.bf16.msra.mxu0 %v1042
    %1066 = vmatprep.subr.bf16.mxu0 0
    %1067 = vmatpush1.bf16.msra.mxu0 %v1043
    %1068 = vmatprep.subr.bf16.mxu0 0
    %1069 = vmatpush1.bf16.msra.mxu0 0
    %1070 = vmatprep.subr.bf16.mxu0 0
    %1071 = vmatpush1.bf16.msra.mxu0 0
    %1072 = vmatprep.subr.bf16.mxu0 0
    %1073 = vmatpush1.bf16.msra.mxu0 0
    %1074 = vmatprep.subr.bf16.mxu0 0
    %1075 = vmatpush1.bf16.msra.mxu0 0
    %1076 = vmatprep.subr.bf16.mxu0 0
    %1077 = vmatpush1.bf16.msra.mxu0 0
    %1078 = vmatprep.subr.bf16.mxu0 0
    %1079 = vmatpush1.bf16.msra.mxu0 0
    %1080 = vmatprep.subr.bf16.mxu0 0
    %1081 = vmatpush1.bf16.msra.mxu0 0
    %1082 = vmatprep.subr.bf16.mxu0 0
    %1083 = vmatpush1.bf16.msra.mxu0 0
    %1084 = vmatprep.mubr.bf16.mxu0 0
    %1085 = vmatmul.mubr.bf16.gmra.mrb[0].mxu0 %v981
    %v1086 = vpop.f32.mrb[0].mxu0
    %v1087 = vadd.f32 %v1003, %v1086
    %v1088 = vpop.f32.mrb[0].mxu0
    %v1089 = vpop.f32.mrb[0].mxu0
    %v1090 = vadd.f32 %v1003, %v1089
    %v1091 = vpop.f32.mrb[0].mxu0
    %1092 = vdwg.mxu0
    %v1093 = vmax.f32 %v1087, 0.0
    %v1094 = vmax.f32 %v1090, 0.0
    %v1095 = vadd.f32 %v1093, %v979
    %v1096 = vadd.f32 %v1094, %v980
    %v1097 = vpack.c.bf16 %v1096, %v1095
    %v1098 = vld [vmem:[#allocation8] sm:$0xf]
    %v1099 = vld [vmem:[#allocation8 + $0x4] sm:$0xf]
    %v1100 = vld [vmem:[#allocation8 + $0x8] sm:$0xf]
    %v1101 = vld [vmem:[#allocation8 + $0xc] sm:$0xf]
    %v1102 = vld [vmem:[#allocation8 + $0x10] sm:$0xf]
    %v1103 = vld [vmem:[#allocation8 + $0x14] sm:$0xf]
    %v1104 = vld [vmem:[#allocation8 + $0x18] sm:$0xf]
    %v1105 = vld [vmem:[#allocation8 + $0x1c] sm:$0xf]
    %v1106 = vld [vmem:[#allocation8 + $0x20] sm:$0xf]
    %v1107 = vld [vmem:[#allocation8 + $0x24] sm:$0xf]
    %v1108 = vld [vmem:[#allocation8 + $0x28] sm:$0xf]
    %v1109 = vld [vmem:[#allocation8 + $0x2c] sm:$0xf]
    %v1110 = vld [vmem:[#allocation8 + $0x30] sm:$0xf]
    %v1111 = vld [vmem:[#allocation8 + $0x34] sm:$0xf]
    %v1112 = vld [vmem:[#allocation8 + $0x38] sm:$0xf]
    %v1113 = vld [vmem:[#allocation8 + $0x3c] sm:$0xf]
    %v1114 = vld [vmem:[%s5] sm:$0x1]
    %v1116 = vlaneseq
    %v1117 = vshrl.u32 %v1116, 7
    %v1118 = vsub.s32 0, %v1117
    %v1119 = vrot.slane %v1114, %v1118
    %v1137 = vunpack.c.l.b16 %v1098
    %v1138 = vunpack.c.l.b16 %v1099
    %v1139 = vunpack.c.l.b16 %v1100
    %v1140 = vunpack.c.l.b16 %v1101
    %v1141 = vunpack.c.l.b16 %v1102
    %v1142 = vunpack.c.l.b16 %v1103
    %v1143 = vunpack.c.l.b16 %v1104
    %v1144 = vunpack.c.l.b16 %v1105
    %v1145 = vunpack.c.l.b16 %v1106
    %v1146 = vunpack.c.l.b16 %v1107
    %v1147 = vunpack.c.l.b16 %v1108
    %v1148 = vunpack.c.l.b16 %v1109
    %v1149 = vunpack.c.l.b16 %v1110
    %v1150 = vunpack.c.l.b16 %v1111
    %v1151 = vunpack.c.l.b16 %v1112
    %v1152 = vunpack.c.l.b16 %v1113
    %v1153 = vpack.c.b16 %v1138, %v1137
    %v1154 = vpack.c.b16 %v1140, %v1139
    %v1155 = vpack.c.b16 %v1142, %v1141
    %v1156 = vpack.c.b16 %v1144, %v1143
    %v1157 = vpack.c.b16 %v1146, %v1145
    %v1158 = vpack.c.b16 %v1148, %v1147
    %v1159 = vpack.c.b16 %v1150, %v1149
    %v1160 = vpack.c.b16 %v1152, %v1151
    %1169 = vmatprep.subr.bf16.mxu0 0
    %1170 = vmatpush1.bf16.msra.mxu0 %v1153
    %1171 = vmatprep.subr.bf16.mxu0 0
    %1172 = vmatpush1.bf16.msra.mxu0 %v1154
    %1173 = vmatprep.subr.bf16.mxu0 0
    %1174 = vmatpush1.bf16.msra.mxu0 %v1155
    %1175 = vmatprep.subr.bf16.mxu0 0
    %1176 = vmatpush1.bf16.msra.mxu0 %v1156
    %1177 = vmatprep.subr.bf16.mxu0 0
    %1178 = vmatpush1.bf16.msra.mxu0 %v1157
    %1179 = vmatprep.subr.bf16.mxu0 0
    %1180 = vmatpush1.bf16.msra.mxu0 %v1158
    %1181 = vmatprep.subr.bf16.mxu0 0
    %1182 = vmatpush1.bf16.msra.mxu0 %v1159
    %1183 = vmatprep.subr.bf16.mxu0 0
    %1184 = vmatpush1.bf16.msra.mxu0 %v1160
    %1185 = vmatprep.subr.bf16.mxu0 0
    %1186 = vmatpush1.bf16.msra.mxu0 0
    %1187 = vmatprep.subr.bf16.mxu0 0
    %1188 = vmatpush1.bf16.msra.mxu0 0
    %1189 = vmatprep.subr.bf16.mxu0 0
    %1190 = vmatpush1.bf16.msra.mxu0 0
    %1191 = vmatprep.subr.bf16.mxu0 0
    %1192 = vmatpush1.bf16.msra.mxu0 0
    %1193 = vmatprep.subr.bf16.mxu0 0
    %1194 = vmatpush1.bf16.msra.mxu0 0
    %1195 = vmatprep.subr.bf16.mxu0 0
    %1196 = vmatpush1.bf16.msra.mxu0 0
    %1197 = vmatprep.subr.bf16.mxu0 0
    %1198 = vmatpush1.bf16.msra.mxu0 0
    %1199 = vmatprep.subr.bf16.mxu0 0
    %1200 = vmatpush1.bf16.msra.mxu0 0
    %1201 = vmatprep.mubr.bf16.mxu0 0
    %1202 = vmatmul.mubr.bf16.gmra.mrb[0].mxu0 %v1097
    %v1203 = vpop.f32.mrb[0].mxu0
    %v1204 = vadd.f32 %v1119, %v1203
    %v1205 = vpop.f32.mrb[0].mxu0
    %v1206 = vpop.f32.mrb[0].mxu0
    %v1207 = vadd.f32 %v1119, %v1206
    %v1208 = vpop.f32.mrb[0].mxu0
    %1209 = vdwg.mxu0
    %1210 = vst [vmem:[#allocation10] sm:$0xff] %v1204
    %1211 = vst [vmem:[#allocation10 + $0x8] sm:$0xff] %v1207
    // Predicated region
    $region42: #{tpu_custom_call.1} parent=1 // pred_check
      _
    $region43: #{tpu_custom_call.1} parent=1 // pred_check_branch
      %1213 = sbr.rel (0) target = $region45
    $region44: #{tpu_custom_call.1} parent=1 // pred_region
      %s1215 = ssub.s32 256, 32
      %1216 = vsyncadd [#allocation4], %s1215
      %s1217 = sshll.u32 [#allocation10], 4
      %s1218 = int_to_ptr.vmem [resolvable:$true] %s1217
      %1223 = dma.vmem_to_hbm [thread:$0]  %s1218, 32, %s6, [#allocation4], 32, 32, 2
    $region45: #{tpu_custom_call.1} parent=1 // pred_fallthru
      _
    // Predicated region
    $region46: #{tpu_custom_call.1} parent=1 // pred_check
      _
    $region47: #{tpu_custom_call.1} parent=1 // pred_check_branch
      %1225 = sbr.rel (0) target = $region49
    $region48: #{tpu_custom_call.1} parent=1 // pred_region
      %1226 = dma.done [#allocation4], 256
    $region49: #{tpu_custom_call.1} parent=1 // pred_fallthru
      _
    %1227 = vsyncpa [#allocation3], 1
    %1228 = vsyncpa [#allocation6], 1
    %1229 = vsyncpa [#allocation9], 1
    %1230 = vsyncpa [#allocation4], 1

</llo_original>
